<compile_context>
chip_gen: v6e
topology: v6e:2x2x1
jax: 0.10.0
libtpu: 0.0.40
codegen_flags: <defaults>
</compile_context>

<pallas_src>
import jax
import jax.numpy as jnp
from jax.experimental import pallas as pl
from jax.experimental.pallas import tpu as pltpu

LANE = 128      # TPU vreg lane width
SUBLANE = 8     # f32 sublane count


def _rup(n, m):
    return ((n + m - 1) // m) * m


# ---------------------------------------------------------------------------
# Kernel: 4-matmul MLP chain (dueling combine folded into the final weight).
# bf16 operands on the MXU, f32 accumulation + f32 bias/ReLU epilogue.
# ---------------------------------------------------------------------------
def qnetwork_kernel(x_ref,
                    w1_ref, b1_ref,      # feature layer 1
                    w2_ref, b2_ref,      # feature layer 2
                    wh_ref, bh_ref,      # fused [value | advantage] hidden layer
                    wf_ref, bf_ref,      # fused output layer (+ dueling combine)
                    q_ref):
    x = x_ref[...].astype(jnp.bfloat16)

    h = jnp.dot(x, w1_ref[...], preferred_element_type=jnp.float32) + b1_ref[...]
    h = jnp.maximum(h, 0.0)

    feat = jnp.dot(h.astype(jnp.bfloat16), w2_ref[...],
                   preferred_element_type=jnp.float32) + b2_ref[...]
    feat = jnp.maximum(feat, 0.0)

    hh = jnp.dot(feat.astype(jnp.bfloat16), wh_ref[...],
                 preferred_element_type=jnp.float32) + bh_ref[...]
    hh = jnp.maximum(hh, 0.0)

    # Narrow (action_size-lane) output: masked store, tiny vs. saved HBM bytes.
    q_ref[...] = jnp.dot(hh.astype(jnp.bfloat16), wf_ref[...],
                         preferred_element_type=jnp.float32) + bf_ref[...]


# ---------------------------------------------------------------------------
# One-time parameter preparation (transpose, fuse heads, fold dueling combine,
# pad only the hidden dims to 128 lanes, cast matmul weights to bf16).
# ---------------------------------------------------------------------------
def prepare_params(params, state_size, action_size, hidden_layer):
    h0, h1 = hidden_layer[0], hidden_layer[1]
    hl = hidden_layer[-1]
    f32 = lambda a: jnp.asarray(a, jnp.float32)

    H0_pad = _rup(h0, LANE)
    H1_pad = _rup(h1, LANE)
    HH_pad = _rup(2 * hl, LANE)

    def pad2(m, rows, cols, dtype=jnp.bfloat16):
        out = jnp.zeros((rows, cols), jnp.float32).at[:m.shape[0], :m.shape[1]].set(m)
        return out.astype(dtype)

    def padrow(v, cols):
        return jnp.zeros((1, cols), jnp.float32).at[0, :v.shape[0]].set(v)

    # feature_fc (torch W:[out,in] -> transpose to [in,out]); contraction dim
    # of the first layer stays at state_size (no input lane padding).
    W1 = pad2(f32(params["w1"]).T, state_size, H0_pad)
    b1 = padrow(f32(params["b1"]), H0_pad)
    W2 = pad2(f32(params["w2"]).T, H0_pad, H1_pad)
    b2 = padrow(f32(params["b2"]), H1_pad)

    # fused head hidden layer: cols [0:hl] = value hidden, [hl:2hl] = advantage hidden
    wh = jnp.concatenate([f32(params["wv1"]).T, f32(params["wa1"]).T], axis=1)   # [hl, 2hl]
    bh_raw = jnp.concatenate([f32(params["bv1"]), f32(params["ba1"])])           # [2hl]
    Wh = pad2(wh, H1_pad, HH_pad)
    bh = padrow(bh_raw, HH_pad)

    # fused output layer with the dueling combine folded in:
    #   q[:, a] = hh[:, :hl] @ wv2 + bv2
    #           + hh[:, hl:] @ (wa2[a] - mean_j wa2[j]) + (ba2[a] - mean(ba2))
    wv2 = f32(params["wv2"])             # [1, hl]
    wa2 = f32(params["wa2"])             # [A, hl]
    bv2 = f32(params["bv2"])             # [1]
    ba2 = f32(params["ba2"])             # [A]
    wa2_c = wa2 - jnp.mean(wa2, axis=0, keepdims=True)   # centered advantage weights
    ba2_c = ba2 - jnp.mean(ba2)

    Wf = jnp.zeros((HH_pad, action_size), jnp.float32)
    Wf = Wf.at[:hl, :].set(jnp.broadcast_to(wv2.T, (hl, action_size)))
    Wf = Wf.at[hl:2 * hl, :].set(wa2_c.T)
    Wf = Wf.astype(jnp.bfloat16)
    bf = jnp.zeros((1, action_size), jnp.float32).at[0, :].set(bv2[0] + ba2_c)

    return dict(W1=W1, b1=b1, W2=W2, b2=b2, Wh=Wh, bh=bh, Wf=Wf, bf=bf,
                state_size=state_size, action_size=action_size)


# ---------------------------------------------------------------------------
# Batch-tile selection: minimize padded (throwaway) rows, prefer >=2 grid
# steps (v7x two-TensorCore sharding via "parallel"), prefer bigger tiles
# (fewer per-step overheads). All sizes stay multiples of 8 (f32 sublanes).
# ---------------------------------------------------------------------------
def _choose_batch_tile(batch, max_tile):
    b8 = _rup(max(batch, 1), SUBLANE)
    if b8 <= 64:
        return b8, b8                          # tiny acting batches: one step, zero waste
    candidates = {128, 256, 512, 1024,
                  _rup(pl.cdiv(b8, 2), SUBLANE),
                  _rup(pl.cdiv(b8, 4), SUBLANE)}
    best = None
    for t in sorted(c for c in candidates if SUBLANE <= c <= max_tile):
        b_pad = _rup(b8, t)
        waste = b_pad - b8
        steps = b_pad // t
        key = (waste, 0 if steps >= 2 else 1, -t)
        if best is None or key < best[0]:
            best = (key, t, b_pad)
    if best is None:                            # pathological max_tile: safe fallback
        t = max(SUBLANE, (min(max_tile, b8) // SUBLANE) * SUBLANE)
        return t, _rup(b8, t)
    _, tb, b_pad = best
    return tb, b_pad


# ---------------------------------------------------------------------------
# Jitted forward closure over the prepared parameters.
# ---------------------------------------------------------------------------
def make_qnetwork_forward(prepared, max_batch_tile=1024):
    weights = (prepared["W1"], prepared["b1"], prepared["W2"], prepared["b2"],
               prepared["Wh"], prepared["bh"], prepared["Wf"], prepared["bf"])
    S = prepared["state_size"]
    A = prepared["action_size"]

    def resident_spec(arr):
        # Whole array, same block every grid step -> stays VMEM-resident.
        # A single pipeline buffer suffices (never re-fetched).
        try:
            return pl.BlockSpec(arr.shape, lambda i: (0, 0),
                                pipeline_mode=pl.Buffered(1))
        except TypeError:
            return pl.BlockSpec(arr.shape, lambda i: (0, 0))

    weight_specs = [resident_spec(w) for w in weights]

    @jax.jit
    def forward(state):
        B = state.shape[0]
        TB, B_pad = _choose_batch_tile(B, max_batch_tile)

        x = state.astype(jnp.float32)
        if B_pad != B:
            # Row padding only (feature dim stays at state_size); skipped when
            # the batch already fits the tile grid.
            x = jnp.zeros((B_pad, S), jnp.float32).at[:B, :].set(x)

        q_pad = pl.pallas_call(
            qnetwork_kernel,
            out_shape=jax.ShapeDtypeStruct((B_pad, A), jnp.float32),
            grid=(B_pad // TB,),
            in_specs=[pl.BlockSpec((TB, S), lambda i: (i, 0))] + weight_specs,
            out_specs=pl.BlockSpec((TB, A), lambda i: (i, 0)),
            compiler_params=pltpu.CompilerParams(
                dimension_semantics=("parallel",)),
        )(x, *weights)

        return q_pad[:B] if B_pad != B else q_pad

    return forward


# ---------------------------------------------------------------------------
# Synthetic init + pure-JAX reference (unfused, f32) for correctness checking.
# ---------------------------------------------------------------------------
def init_params(key, state_size, action_size, hidden_layer):
    """Deterministic synthetic init (PyTorch Linear shape convention W:[out,in])."""
    h0, h1 = hidden_layer[0], hidden_layer[1]
    hl = hidden_layer[-1]
    shapes = {
        "w1": (h0, state_size), "b1": (h0,),
        "w2": (h1, h0),         "b2": (h1,),
        "wv1": (hl, hl),        "bv1": (hl,),
        "wv2": (1, hl),         "bv2": (1,),
        "wa1": (hl, hl),        "ba1": (hl,),
        "wa2": (action_size, hl), "ba2": (action_size,),
    }
    params = {}
    keys = jax.random.split(key, len(shapes))
    for k, (name, shp) in zip(keys, sorted(shapes.items())):
        fan_in = shp[-1] if len(shp) > 1 else max(shp[0], 1)
        bound = 1.0 / jnp.sqrt(jnp.float32(fan_in))
        params[name] = jax.random.uniform(k, shp, jnp.float32, -bound, bound)
    return params


def qnetwork_ref(state, params):
    def lin(x, w, b):
        return x @ w.T + b
    h = jax.nn.relu(lin(state, params["w1"], params["b1"]))
    feat = jax.nn.relu(lin(h, params["w2"], params["b2"]))
    v = lin(jax.nn.relu(lin(feat, params["wv1"], params["bv1"])), params["wv2"], params["bv2"])
    a = lin(jax.nn.relu(lin(feat, params["wa1"], params["ba1"])), params["wa2"], params["ba2"])
    return v + (a - a.mean(axis=1, keepdims=True))


if __name__ == "__main__":
    B, STATE_SIZE, ACTION_SIZE = 8, 16, 4
    HIDDEN = [64, 64]

    key = jax.random.PRNGKey(0)
    k_state, k_params = jax.random.split(key)
    state = jax.random.normal(k_state, (B, STATE_SIZE), jnp.float32)
    params = init_params(k_params, STATE_SIZE, ACTION_SIZE, HIDDEN)

    prepared = prepare_params(params, STATE_SIZE, ACTION_SIZE, HIDDEN)
    qnetwork_forward = make_qnetwork_forward(prepared)

    # Small (acting-size) batch.
    q = jax.block_until_ready(qnetwork_forward(state))
    q_ref = qnetwork_ref(state, params)
    assert q.shape == (B, ACTION_SIZE)
    # bf16 matmul operands -> looser tolerance than the pure-f32 reference chain.
    assert jnp.allclose(q, q_ref, atol=5e-2, rtol=5e-2), "mismatch vs reference (small batch)"

    # Replay-size batch exercising row padding + multi-step parallel grid.
    B2 = 300
    state2 = jax.random.normal(jax.random.PRNGKey(1), (B2, STATE_SIZE), jnp.float32)
    q2 = jax.block_until_ready(qnetwork_forward(state2))
    q2_ref = qnetwork_ref(state2, params)
    assert q2.shape == (B2, ACTION_SIZE)
    assert jnp.allclose(q2, q2_ref, atol=5e-2, rtol=5e-2), "mismatch vs reference (replay batch)"

    print("KERNEL_OK")
</pallas_src>

<mosaic_0001>
module attributes {stable_mosaic.version = 11 : i64} {
  func.func @qnetwork_kernel(%arg0: i32, %arg1: memref<8x16xf32, #tpu.memory_space<vmem>>, %arg2: memref<16x128xbf16, #tpu.memory_space<vmem>>, %arg3: memref<1x128xf32, #tpu.memory_space<vmem>>, %arg4: memref<128x128xbf16, #tpu.memory_space<vmem>>, %arg5: memref<1x128xf32, #tpu.memory_space<vmem>>, %arg6: memref<128x128xbf16, #tpu.memory_space<vmem>>, %arg7: memref<1x128xf32, #tpu.memory_space<vmem>>, %arg8: memref<128x4xbf16, #tpu.memory_space<vmem>>, %arg9: memref<1x4xf32, #tpu.memory_space<vmem>>, %arg10: memref<8x4xf32, #tpu.memory_space<vmem>>) attributes {dimension_semantics = [#tpu.dimension_semantics<parallel>], iteration_bounds = array<i64: 1>, scalar_prefetch = 0 : i64, scratch_operands = 0 : i64, tpu.core_type = #tpu.core_type<tc>, window_params = [{transform_indices = @transform_0, window_bounds = array<i64: 8, 16>}, {pipeline_mode = #tpu.pipeline_mode<synchronous>, transform_indices = @transform_1, window_bounds = array<i64: 16, 128>}, {pipeline_mode = #tpu.pipeline_mode<synchronous>, transform_indices = @transform_2, window_bounds = array<i64: 1, 128>}, {pipeline_mode = #tpu.pipeline_mode<synchronous>, transform_indices = @transform_3, window_bounds = array<i64: 128, 128>}, {pipeline_mode = #tpu.pipeline_mode<synchronous>, transform_indices = @transform_4, window_bounds = array<i64: 1, 128>}, {pipeline_mode = #tpu.pipeline_mode<synchronous>, transform_indices = @transform_5, window_bounds = array<i64: 128, 128>}, {pipeline_mode = #tpu.pipeline_mode<synchronous>, transform_indices = @transform_6, window_bounds = array<i64: 1, 128>}, {pipeline_mode = #tpu.pipeline_mode<synchronous>, transform_indices = @transform_7, window_bounds = array<i64: 128, 4>}, {pipeline_mode = #tpu.pipeline_mode<synchronous>, transform_indices = @transform_8, window_bounds = array<i64: 1, 4>}, {transform_indices = @transform_9, window_bounds = array<i64: 8, 4>}]} {
    %c0 = arith.constant 0 : index
    %c0_0 = arith.constant 0 : index
    %0 = vector.load %arg1[%c0, %c0_0] : memref<8x16xf32, #tpu.memory_space<vmem>>, vector<8x16xf32>
    %1 = arith.truncf %0 : vector<8x16xf32> to vector<8x16xbf16>
    %c0_1 = arith.constant 0 : index
    %c0_2 = arith.constant 0 : index
    %2 = vector.load %arg2[%c0_1, %c0_2] : memref<16x128xbf16, #tpu.memory_space<vmem>>, vector<16x128xbf16>
    %cst = arith.constant dense<0.000000e+00> : vector<8x128xf32>
    %3 = tpu.matmul %1, %2, %cst {dimension_numbers = #tpu.dot_dimension_numbers<[1], [0], [0], [1], [0, 0, 1, 1], [], []>} : vector<8x16xbf16>, vector<16x128xbf16>, vector<8x128xf32> -> vector<8x128xf32>
    %c0_3 = arith.constant 0 : index
    %c0_4 = arith.constant 0 : index
    %4 = vector.load %arg3[%c0_3, %c0_4] : memref<1x128xf32, #tpu.memory_space<vmem>>, vector<1x128xf32>
    %5 = vector.broadcast %4 : vector<1x128xf32> to vector<8x128xf32>
    %6 = arith.addf %3, %5 : vector<8x128xf32>
    %cst_5 = arith.constant 0.000000e+00 : f32
    %7 = vector.broadcast %cst_5 : f32 to vector<8x128xf32>
    %8 = arith.maximumf %6, %7 : vector<8x128xf32>
    %9 = arith.truncf %8 : vector<8x128xf32> to vector<8x128xbf16>
    %c0_6 = arith.constant 0 : index
    %c0_7 = arith.constant 0 : index
    %10 = vector.load %arg4[%c0_6, %c0_7] : memref<128x128xbf16, #tpu.memory_space<vmem>>, vector<128x128xbf16>
    %cst_8 = arith.constant dense<0.000000e+00> : vector<8x128xf32>
    %11 = tpu.matmul %9, %10, %cst_8 {dimension_numbers = #tpu.dot_dimension_numbers<[1], [0], [0], [1], [0, 0, 1, 1], [], []>} : vector<8x128xbf16>, vector<128x128xbf16>, vector<8x128xf32> -> vector<8x128xf32>
    %c0_9 = arith.constant 0 : index
    %c0_10 = arith.constant 0 : index
    %12 = vector.load %arg5[%c0_9, %c0_10] : memref<1x128xf32, #tpu.memory_space<vmem>>, vector<1x128xf32>
    %13 = vector.broadcast %12 : vector<1x128xf32> to vector<8x128xf32>
    %14 = arith.addf %11, %13 : vector<8x128xf32>
    %cst_11 = arith.constant 0.000000e+00 : f32
    %15 = vector.broadcast %cst_11 : f32 to vector<8x128xf32>
    %16 = arith.maximumf %14, %15 : vector<8x128xf32>
    %17 = arith.truncf %16 : vector<8x128xf32> to vector<8x128xbf16>
    %c0_12 = arith.constant 0 : index
    %c0_13 = arith.constant 0 : index
    %18 = vector.load %arg6[%c0_12, %c0_13] : memref<128x128xbf16, #tpu.memory_space<vmem>>, vector<128x128xbf16>
    %cst_14 = arith.constant dense<0.000000e+00> : vector<8x128xf32>
    %19 = tpu.matmul %17, %18, %cst_14 {dimension_numbers = #tpu.dot_dimension_numbers<[1], [0], [0], [1], [0, 0, 1, 1], [], []>} : vector<8x128xbf16>, vector<128x128xbf16>, vector<8x128xf32> -> vector<8x128xf32>
    %c0_15 = arith.constant 0 : index
    %c0_16 = arith.constant 0 : index
    %20 = vector.load %arg7[%c0_15, %c0_16] : memref<1x128xf32, #tpu.memory_space<vmem>>, vector<1x128xf32>
    %21 = vector.broadcast %20 : vector<1x128xf32> to vector<8x128xf32>
    %22 = arith.addf %19, %21 : vector<8x128xf32>
    %cst_17 = arith.constant 0.000000e+00 : f32
    %23 = vector.broadcast %cst_17 : f32 to vector<8x128xf32>
    %24 = arith.maximumf %22, %23 : vector<8x128xf32>
    %25 = arith.truncf %24 : vector<8x128xf32> to vector<8x128xbf16>
    %c0_18 = arith.constant 0 : index
    %c0_19 = arith.constant 0 : index
    %26 = vector.load %arg8[%c0_18, %c0_19] : memref<128x4xbf16, #tpu.memory_space<vmem>>, vector<128x4xbf16>
    %cst_20 = arith.constant dense<0.000000e+00> : vector<8x4xf32>
    %27 = tpu.matmul %25, %26, %cst_20 {dimension_numbers = #tpu.dot_dimension_numbers<[1], [0], [0], [1], [0, 0, 1, 1], [], []>} : vector<8x128xbf16>, vector<128x4xbf16>, vector<8x4xf32> -> vector<8x4xf32>
    %c0_21 = arith.constant 0 : index
    %c0_22 = arith.constant 0 : index
    %28 = vector.load %arg9[%c0_21, %c0_22] : memref<1x4xf32, #tpu.memory_space<vmem>>, vector<1x4xf32>
    %29 = vector.broadcast %28 : vector<1x4xf32> to vector<8x4xf32>
    %30 = arith.addf %27, %29 : vector<8x4xf32>
    %c0_23 = arith.constant 0 : index
    %c0_24 = arith.constant 0 : index
    %31 = vector.load %arg10[%c0_23, %c0_24] : memref<8x4xf32, #tpu.memory_space<vmem>>, vector<8x4xf32>
    tpu.vector_store %arg10[%c0_23, %c0_24], %30 {strides = array<i32>} : memref<8x4xf32, #tpu.memory_space<vmem>>, vector<8x4xf32>,
    return
  }
  func.func @transform_0(%arg0: i32) -> (i32, i32) {
    %c0_i32 = arith.constant 0 : i32
    %c0_i32_0 = arith.constant 0 : i32
    return %arg0, %c0_i32 : i32, i32
  }
  func.func @transform_1(%arg0: i32) -> (i32, i32) {
    %c0_i32 = arith.constant 0 : i32
    %c0_i32_0 = arith.constant 0 : i32
    %c0_i32_1 = arith.constant 0 : i32
    return %c0_i32, %c0_i32_0 : i32, i32
  }
  func.func @transform_2(%arg0: i32) -> (i32, i32) {
    %c0_i32 = arith.constant 0 : i32
    %c0_i32_0 = arith.constant 0 : i32
    %c0_i32_1 = arith.constant 0 : i32
    return %c0_i32, %c0_i32_0 : i32, i32
  }
  func.func @transform_3(%arg0: i32) -> (i32, i32) {
    %c0_i32 = arith.constant 0 : i32
    %c0_i32_0 = arith.constant 0 : i32
    %c0_i32_1 = arith.constant 0 : i32
    return %c0_i32, %c0_i32_0 : i32, i32
  }
  func.func @transform_4(%arg0: i32) -> (i32, i32) {
    %c0_i32 = arith.constant 0 : i32
    %c0_i32_0 = arith.constant 0 : i32
    %c0_i32_1 = arith.constant 0 : i32
    return %c0_i32, %c0_i32_0 : i32, i32
  }
  func.func @transform_5(%arg0: i32) -> (i32, i32) {
    %c0_i32 = arith.constant 0 : i32
    %c0_i32_0 = arith.constant 0 : i32
    %c0_i32_1 = arith.constant 0 : i32
    return %c0_i32, %c0_i32_0 : i32, i32
  }
  func.func @transform_6(%arg0: i32) -> (i32, i32) {
    %c0_i32 = arith.constant 0 : i32
    %c0_i32_0 = arith.constant 0 : i32
    %c0_i32_1 = arith.constant 0 : i32
    return %c0_i32, %c0_i32_0 : i32, i32
  }
  func.func @transform_7(%arg0: i32) -> (i32, i32) {
    %c0_i32 = arith.constant 0 : i32
    %c0_i32_0 = arith.constant 0 : i32
    %c0_i32_1 = arith.constant 0 : i32
    return %c0_i32, %c0_i32_0 : i32, i32
  }
  func.func @transform_8(%arg0: i32) -> (i32, i32) {
    %c0_i32 = arith.constant 0 : i32
    %c0_i32_0 = arith.constant 0 : i32
    %c0_i32_1 = arith.constant 0 : i32
    return %c0_i32, %c0_i32_0 : i32, i32
  }
  func.func @transform_9(%arg0: i32) -> (i32, i32) {
    %c0_i32 = arith.constant 0 : i32
    %c0_i32_0 = arith.constant 0 : i32
    return %arg0, %c0_i32 : i32, i32
  }
}

</mosaic_0001>

<llo_original>
// kernel: forward.1
$region0: #{forward.1}
  #allocation0 [shape = 'u32[]', space=smem, size = 0x4, offset = 0x4, fixed_abs, tag = 'smem constant byte address 0x4 - core index']
  #allocation1 [shape = 'u32[144,128]{1,0:T(1,128)}', space=vmem, size = 0x12000, scoped, tag = 'internal scratch']
  %s0 = inlined_call_operand.hbm [shape: f32[8,16], index: 0, kind: input, shape index: {}]
  %s1 = inlined_call_operand.hbm [shape: bf16[16,128], index: 1, kind: input, shape index: {}]
  %s2 = inlined_call_operand.hbm [shape: f32[1,128], index: 2, kind: input, shape index: {}]
  %s3 = inlined_call_operand.hbm [shape: bf16[128,128], index: 3, kind: input, shape index: {}]
  %s4 = inlined_call_operand.vmem [shape: f32[1,128], index: 4, kind: input, shape index: {}]
  %s5 = inlined_call_operand.hbm [shape: bf16[128,128], index: 5, kind: input, shape index: {}]
  %s6 = inlined_call_operand.vmem [shape: f32[1,128], index: 6, kind: input, shape index: {}]
  %s7 = inlined_call_operand.hbm [shape: bf16[128,4], index: 7, kind: input, shape index: {}]
  %s8 = inlined_call_operand.vmem [shape: f32[1,4], index: 8, kind: input, shape index: {}]
  %s9 = inlined_call_operand.vmem [shape: f32[8,4], index: 9, kind: output, shape index: {}]
  %s10 = sld [smem:[#allocation0]]
  $region70: #{forward.1} parent=0
    _
  %s12 = ssub.s32 1, %s10
  %s13 = scalar_select 0, %s12, %s10
  $region1: #{forward.1} parent=0
    #allocation2 [shape = 'u8[4096]{0}', space=vmem, size = 0x1000, scoped, tag = 'input window, operand 0, single buffered']
    #allocation3 [shape = 's32[1]{0}', space=sflag, size = 0x4, scoped, tag = 'scoped memory for forward.1']
    #allocation4 [shape = 'u8[4096]{0}', space=vmem, size = 0x1000, scoped, tag = 'input window, operand 1, single buffered']
    #allocation5 [shape = 's32[1]{0}', space=sflag, size = 0x4, scoped, tag = 'scoped memory for forward.1']
    #allocation6 [shape = 'u8[512]{0}', space=vmem, size = 0x400, scoped, tag = 'input window, operand 2, single buffered']
    #allocation7 [shape = 'u8[32768]{0}', space=vmem, size = 0x8000, scoped, tag = 'input window, operand 3, single buffered']
    #allocation8 [shape = 's32[1]{0}', space=sflag, size = 0x4, scoped, tag = 'scoped memory for forward.1']
    #allocation9 [shape = 'u8[32768]{0}', space=vmem, size = 0x8000, scoped, tag = 'input window, operand 5, single buffered']
    #allocation10 [shape = 'u8[32768]{0}', space=vmem, size = 0x8000, scoped, tag = 'input window, operand 7, single buffered']
    #allocation11 [shape = 's32[1]{0}', space=sflag, size = 0x4, scoped, tag = 'scoped memory for forward.1']
    %14 = vsyncpa [#allocation3], 0
    %15 = vsyncpa [#allocation5], 0
    %16 = vsyncpa [#allocation8], 0
    %17 = vsyncpa [#allocation11], 0
    // Predicated region
    $region2: #{forward.1} parent=1 // pred_check
      _
    $region3: #{forward.1} parent=1 // pred_check_branch
      %19 = sbr.rel (0) target = $region5
    $region4: #{forward.1} parent=1 // pred_region
      %s21 = ssub.s32 128, 128
      %22 = vsyncadd [#allocation3], %s21
      %s24 = sshll.u32 [#allocation2], 4
      %s25 = int_to_ptr.vmem [resolvable:$true] %s24
      %27 = dma.hbm_to_vmem [thread:$0]  %s0, 128, %s25, [#allocation3]
    $region5: #{forward.1} parent=1 // pred_fallthru
      _
    // Predicated region
    $region6: #{forward.1} parent=1 // pred_check
      _
    $region7: #{forward.1} parent=1 // pred_check_branch
      %29 = sbr.rel (0) target = $region9
    $region8: #{forward.1} parent=1 // pred_region
      %s31 = ssub.s32 128, 128
      %32 = vsyncadd [#allocation5], %s31
      %s33 = sshll.u32 [#allocation4], 4
      %s34 = int_to_ptr.vmem [resolvable:$true] %s33
      %39 = dma.hbm_to_vmem [thread:$0]  %s1, 128, %s34, [#allocation5], 64, 64, 4
    $region9: #{forward.1} parent=1 // pred_fallthru
      _
    // Predicated region
    $region10: #{forward.1} parent=1 // pred_check
      _
    $region11: #{forward.1} parent=1 // pred_check_branch
      %41 = sbr.rel (0) target = $region13
    $region12: #{forward.1} parent=1 // pred_region
      %s43 = ssub.s32 16, 16
      %44 = vsyncadd [#allocation5], %s43
      %s46 = sshll.u32 [#allocation6], 4
      %s47 = int_to_ptr.vmem [resolvable:$true] %s46
      %49 = dma.hbm_to_vmem [thread:$0]  %s2, 16, %s47, [#allocation5]
    $region13: #{forward.1} parent=1 // pred_fallthru
      _
    // Predicated region
    $region14: #{forward.1} parent=1 // pred_check
      _
    $region15: #{forward.1} parent=1 // pred_check_branch
      %51 = sbr.rel (0) target = $region17
    $region16: #{forward.1} parent=1 // pred_region
      %s53 = ssub.s32 1024, 1024
      %54 = vsyncadd [#allocation8], %s53
      %s55 = sshll.u32 [#allocation7], 4
      %s56 = int_to_ptr.vmem [resolvable:$true] %s55
      %61 = dma.hbm_to_vmem [thread:$0]  %s3, 1024, %s56, [#allocation8], 64, 64, 4
    $region17: #{forward.1} parent=1 // pred_fallthru
      _
    // Predicated region
    $region18: #{forward.1} parent=1 // pred_check
      _
    $region19: #{forward.1} parent=1 // pred_check_branch
      %63 = sbr.rel (0) target = $region21
    $region20: #{forward.1} parent=1 // pred_region
      _
    $region21: #{forward.1} parent=1 // pred_fallthru
      _
    // Predicated region
    $region22: #{forward.1} parent=1 // pred_check
      _
    $region23: #{forward.1} parent=1 // pred_check_branch
      %65 = sbr.rel (0) target = $region25
    $region24: #{forward.1} parent=1 // pred_region
      %s67 = ssub.s32 1024, 1024
      %68 = vsyncadd [#allocation8], %s67
      %s69 = sshll.u32 [#allocation9], 4
      %s70 = int_to_ptr.vmem [resolvable:$true] %s69
      %75 = dma.hbm_to_vmem [thread:$0]  %s5, 1024, %s70, [#allocation8], 64, 64, 4
    $region25: #{forward.1} parent=1 // pred_fallthru
      _
    // Predicated region
    $region26: #{forward.1} parent=1 // pred_check
      _
    $region27: #{forward.1} parent=1 // pred_check_branch
      %77 = sbr.rel (0) target = $region29
    $region28: #{forward.1} parent=1 // pred_region
      _
    $region29: #{forward.1} parent=1 // pred_fallthru
      _
    // Predicated region
    $region30: #{forward.1} parent=1 // pred_check
      _
    $region31: #{forward.1} parent=1 // pred_check_branch
      %79 = sbr.rel (0) target = $region33
    $region32: #{forward.1} parent=1 // pred_region
      %s81 = ssub.s32 1024, 1024
      %82 = vsyncadd [#allocation11], %s81
      %s83 = sshll.u32 [#allocation10], 4
      %s84 = int_to_ptr.vmem [resolvable:$true] %s83
      %89 = dma.hbm_to_vmem [thread:$0]  %s7, 1024, %s84, [#allocation11], 64, 64, 4
    $region33: #{forward.1} parent=1 // pred_fallthru
      _
    // Predicated region
    $region34: #{forward.1} parent=1 // pred_check
      _
    $region35: #{forward.1} parent=1 // pred_check_branch
      %91 = sbr.rel (0) target = $region37
    $region36: #{forward.1} parent=1 // pred_region
      _
    $region37: #{forward.1} parent=1 // pred_fallthru
      _
    // Predicated region
    $region38: #{forward.1} parent=1 // pred_check
      _
    $region39: #{forward.1} parent=1 // pred_check_branch
      %93 = sbr.rel (0) target = $region41
    $region40: #{forward.1} parent=1 // pred_region
      %94 = dma.done [#allocation3], 128
    $region41: #{forward.1} parent=1 // pred_fallthru
      _
    // Predicated region
    $region42: #{forward.1} parent=1 // pred_check
      _
    $region43: #{forward.1} parent=1 // pred_check_branch
      %96 = sbr.rel (0) target = $region45
    $region44: #{forward.1} parent=1 // pred_region
      %97 = dma.done [#allocation5], 128
    $region45: #{forward.1} parent=1 // pred_fallthru
      _
    // Predicated region
    $region46: #{forward.1} parent=1 // pred_check
      _
    $region47: #{forward.1} parent=1 // pred_check_branch
      %99 = sbr.rel (0) target = $region49
    $region48: #{forward.1} parent=1 // pred_region
      %100 = dma.done [#allocation5], 16
    $region49: #{forward.1} parent=1 // pred_fallthru
      _
    // Predicated region
    $region50: #{forward.1} parent=1 // pred_check
      _
    $region51: #{forward.1} parent=1 // pred_check_branch
      %102 = sbr.rel (0) target = $region53
    $region52: #{forward.1} parent=1 // pred_region
      %103 = dma.done [#allocation8], 1024
    $region53: #{forward.1} parent=1 // pred_fallthru
      _
    // Predicated region
    $region54: #{forward.1} parent=1 // pred_check
      _
    $region55: #{forward.1} parent=1 // pred_check_branch
      %105 = sbr.rel (0) target = $region57
    $region56: #{forward.1} parent=1 // pred_region
      %106 = dma.done [#allocation8], 1024
    $region57: #{forward.1} parent=1 // pred_fallthru
      _
    // Predicated region
    $region58: #{forward.1} parent=1 // pred_check
      _
    $region59: #{forward.1} parent=1 // pred_check_branch
      %108 = sbr.rel (0) target = $region61
    $region60: #{forward.1} parent=1 // pred_region
      %109 = dma.done [#allocation11], 1024
    $region61: #{forward.1} parent=1 // pred_fallthru
      _
    %v111 = vld [vmem:[#allocation2] sm:$0xff]
    %v112 = vpack.c.bf16 %v111, %v111
    %v113 = vld [vmem:[#allocation4] sm:$0xf]
    %v114 = vld [vmem:[#allocation4 + $0x4] sm:$0xf]
    %v115 = vld [vmem:[#allocation6] sm:$0x1]
    %v117 = vlaneseq
    %v118 = vshrl.u32 %v117, 7
    %v119 = vsub.s32 0, %v118
    %v120 = vrot.slane %v115, %v119
    %v124 = vunpack.c.l.b16 %v113
    %v125 = vunpack.c.l.b16 %v114
    %v126 = vpack.c.b16 %v125, %v124
    %vm128 = vcmask 130048
    %v130 = vsel %vm128, %v112, 0
    %132 = vmatprep.subr.bf16.mxu0 0
    %133 = vmatpush1.bf16.msra.mxu0 0
    %134 = vmatprep.subr.bf16.mxu0 0
    %135 = vmatpush1.bf16.msra.mxu0 0
    %136 = vmatprep.subr.bf16.mxu0 0
    %137 = vmatpush1.bf16.msra.mxu0 0
    %138 = vmatprep.subr.bf16.mxu0 0
    %139 = vmatpush1.bf16.msra.mxu0 0
    %140 = vmatprep.subr.bf16.mxu0 0
    %141 = vmatpush1.bf16.msra.mxu0 0
    %142 = vmatprep.subr.bf16.mxu0 0
    %143 = vmatpush1.bf16.msra.mxu0 0
    %144 = vmatprep.subr.bf16.mxu0 0
    %145 = vmatpush1.bf16.msra.mxu0 0
    %146 = vmatprep.subr.bf16.mxu0 0
    %147 = vmatpush1.bf16.msra.mxu0 %v126
    %148 = vmatprep.subr.bf16.mxu0 0
    %149 = vmatpush2.bf16.msra.mxu0 0
    %150 = vmatprep.subr.bf16.mxu0 0
    %151 = vmatpush2.bf16.msra.mxu0 0
    %152 = vmatprep.subr.bf16.mxu0 0
    %153 = vmatpush2.bf16.msra.mxu0 0
    %154 = vmatprep.subr.bf16.mxu0 0
    %155 = vmatpush2.bf16.msra.mxu0 0
    %156 = vmatprep.subr.bf16.mxu0 0
    %157 = vmatpush2.bf16.msra.mxu0 0
    %158 = vmatprep.subr.bf16.mxu0 0
    %159 = vmatpush2.bf16.msra.mxu0 0
    %160 = vmatprep.subr.bf16.mxu0 0
    %161 = vmatpush2.bf16.msra.mxu0 0
    %162 = vmatprep.subr.bf16.mxu0 0
    %163 = vmatpush2.bf16.msra.mxu0 0
    %164 = vmatprep.mubr.bf16.mxu0 0
    %165 = vmatmul.mubr.bf16.gmra.mxu0 %v130
    %v166 = vpop.f32.mrf.mxu0
    %v167 = vadd.f32 %v120, %v166
    %v168 = vpop.f32.mrf.mxu0
    %v169 = vpop.f32.mrf.mxu0
    %v170 = vpop.f32.mrf.mxu0
    %171 = vdwg.mxu0
    %v172 = vmax.f32 %v167, 0.0
    %v173 = vpack.c.bf16 %v172, %v172
    %v174 = vld [vmem:[#allocation7] sm:$0xf]
    %v175 = vld [vmem:[#allocation7 + $0x4] sm:$0xf]
    %v176 = vld [vmem:[#allocation7 + $0x8] sm:$0xf]
    %v177 = vld [vmem:[#allocation7 + $0xc] sm:$0xf]
    %v178 = vld [vmem:[#allocation7 + $0x10] sm:$0xf]
    %v179 = vld [vmem:[#allocation7 + $0x14] sm:$0xf]
    %v180 = vld [vmem:[#allocation7 + $0x18] sm:$0xf]
    %v181 = vld [vmem:[#allocation7 + $0x1c] sm:$0xf]
    %v182 = vld [vmem:[#allocation7 + $0x20] sm:$0xf]
    %v183 = vld [vmem:[#allocation7 + $0x24] sm:$0xf]
    %v184 = vld [vmem:[#allocation7 + $0x28] sm:$0xf]
    %v185 = vld [vmem:[#allocation7 + $0x2c] sm:$0xf]
    %v186 = vld [vmem:[#allocation7 + $0x30] sm:$0xf]
    %v187 = vld [vmem:[#allocation7 + $0x34] sm:$0xf]
    %v188 = vld [vmem:[#allocation7 + $0x38] sm:$0xf]
    %v189 = vld [vmem:[#allocation7 + $0x3c] sm:$0xf]
    %v190 = vld [vmem:[%s4] sm:$0x1]
    %v192 = vlaneseq
    %v193 = vshrl.u32 %v192, 7
    %v194 = vsub.s32 0, %v193
    %v195 = vrot.slane %v190, %v194
    %v213 = vunpack.c.l.b16 %v174
    %v214 = vunpack.c.l.b16 %v175
    %v215 = vunpack.c.l.b16 %v176
    %v216 = vunpack.c.l.b16 %v177
    %v217 = vunpack.c.l.b16 %v178
    %v218 = vunpack.c.l.b16 %v179
    %v219 = vunpack.c.l.b16 %v180
    %v220 = vunpack.c.l.b16 %v181
    %v221 = vunpack.c.l.b16 %v182
    %v222 = vunpack.c.l.b16 %v183
    %v223 = vunpack.c.l.b16 %v184
    %v224 = vunpack.c.l.b16 %v185
    %v225 = vunpack.c.l.b16 %v186
    %v226 = vunpack.c.l.b16 %v187
    %v227 = vunpack.c.l.b16 %v188
    %v228 = vunpack.c.l.b16 %v189
    %v229 = vpack.c.b16 %v214, %v213
    %v230 = vpack.c.b16 %v216, %v215
    %v231 = vpack.c.b16 %v218, %v217
    %v232 = vpack.c.b16 %v220, %v219
    %v233 = vpack.c.b16 %v222, %v221
    %v234 = vpack.c.b16 %v224, %v223
    %v235 = vpack.c.b16 %v226, %v225
    %v236 = vpack.c.b16 %v228, %v227
    %245 = vmatprep.subr.bf16.mxu0 0
    %246 = vmatpush1.bf16.msra.mxu0 %v236
    %247 = vmatprep.subr.bf16.mxu0 0
    %248 = vmatpush1.bf16.msra.mxu0 %v235
    %249 = vmatprep.subr.bf16.mxu0 0
    %250 = vmatpush1.bf16.msra.mxu0 %v234
    %251 = vmatprep.subr.bf16.mxu0 0
    %252 = vmatpush1.bf16.msra.mxu0 %v233
    %253 = vmatprep.subr.bf16.mxu0 0
    %254 = vmatpush1.bf16.msra.mxu0 %v232
    %255 = vmatprep.subr.bf16.mxu0 0
    %256 = vmatpush1.bf16.msra.mxu0 %v231
    %257 = vmatprep.subr.bf16.mxu0 0
    %258 = vmatpush1.bf16.msra.mxu0 %v230
    %259 = vmatprep.subr.bf16.mxu0 0
    %260 = vmatpush1.bf16.msra.mxu0 %v229
    %261 = vmatprep.subr.bf16.mxu0 0
    %262 = vmatpush2.bf16.msra.mxu0 0
    %263 = vmatprep.subr.bf16.mxu0 0
    %264 = vmatpush2.bf16.msra.mxu0 0
    %265 = vmatprep.subr.bf16.mxu0 0
    %266 = vmatpush2.bf16.msra.mxu0 0
    %267 = vmatprep.subr.bf16.mxu0 0
    %268 = vmatpush2.bf16.msra.mxu0 0
    %269 = vmatprep.subr.bf16.mxu0 0
    %270 = vmatpush2.bf16.msra.mxu0 0
    %271 = vmatprep.subr.bf16.mxu0 0
    %272 = vmatpush2.bf16.msra.mxu0 0
    %273 = vmatprep.subr.bf16.mxu0 0
    %274 = vmatpush2.bf16.msra.mxu0 0
    %275 = vmatprep.subr.bf16.mxu0 0
    %276 = vmatpush2.bf16.msra.mxu0 0
    %277 = vmatprep.mubr.bf16.mxu0 0
    %278 = vmatmul.mubr.bf16.gmra.mxu0 %v173
    %v279 = vpop.f32.mrf.mxu0
    %v280 = vadd.f32 %v195, %v279
    %v281 = vpop.f32.mrf.mxu0
    %v282 = vpop.f32.mrf.mxu0
    %v283 = vpop.f32.mrf.mxu0
    %284 = vdwg.mxu0
    %v285 = vmax.f32 %v280, 0.0
    %v286 = vpack.c.bf16 %v285, %v285
    %v287 = vld [vmem:[#allocation9] sm:$0xf]
    %v288 = vld [vmem:[#allocation9 + $0x4] sm:$0xf]
    %v289 = vld [vmem:[#allocation9 + $0x8] sm:$0xf]
    %v290 = vld [vmem:[#allocation9 + $0xc] sm:$0xf]
    %v291 = vld [vmem:[#allocation9 + $0x10] sm:$0xf]
    %v292 = vld [vmem:[#allocation9 + $0x14] sm:$0xf]
    %v293 = vld [vmem:[#allocation9 + $0x18] sm:$0xf]
    %v294 = vld [vmem:[#allocation9 + $0x1c] sm:$0xf]
    %v295 = vld [vmem:[#allocation9 + $0x20] sm:$0xf]
    %v296 = vld [vmem:[#allocation9 + $0x24] sm:$0xf]
    %v297 = vld [vmem:[#allocation9 + $0x28] sm:$0xf]
    %v298 = vld [vmem:[#allocation9 + $0x2c] sm:$0xf]
    %v299 = vld [vmem:[#allocation9 + $0x30] sm:$0xf]
    %v300 = vld [vmem:[#allocation9 + $0x34] sm:$0xf]
    %v301 = vld [vmem:[#allocation9 + $0x38] sm:$0xf]
    %v302 = vld [vmem:[#allocation9 + $0x3c] sm:$0xf]
    %v303 = vld [vmem:[%s6] sm:$0x1]
    %v305 = vlaneseq
    %v306 = vshrl.u32 %v305, 7
    %v307 = vsub.s32 0, %v306
    %v308 = vrot.slane %v303, %v307
    %v326 = vunpack.c.l.b16 %v287
    %v327 = vunpack.c.l.b16 %v288
    %v328 = vunpack.c.l.b16 %v289
    %v329 = vunpack.c.l.b16 %v290
    %v330 = vunpack.c.l.b16 %v291
    %v331 = vunpack.c.l.b16 %v292
    %v332 = vunpack.c.l.b16 %v293
    %v333 = vunpack.c.l.b16 %v294
    %v334 = vunpack.c.l.b16 %v295
    %v335 = vunpack.c.l.b16 %v296
    %v336 = vunpack.c.l.b16 %v297
    %v337 = vunpack.c.l.b16 %v298
    %v338 = vunpack.c.l.b16 %v299
    %v339 = vunpack.c.l.b16 %v300
    %v340 = vunpack.c.l.b16 %v301
    %v341 = vunpack.c.l.b16 %v302
    %v342 = vpack.c.b16 %v327, %v326
    %v343 = vpack.c.b16 %v329, %v328
    %v344 = vpack.c.b16 %v331, %v330
    %v345 = vpack.c.b16 %v333, %v332
    %v346 = vpack.c.b16 %v335, %v334
    %v347 = vpack.c.b16 %v337, %v336
    %v348 = vpack.c.b16 %v339, %v338
    %v349 = vpack.c.b16 %v341, %v340
    %358 = vmatprep.subr.bf16.mxu0 0
    %359 = vmatpush1.bf16.msra.mxu0 %v349
    %360 = vmatprep.subr.bf16.mxu0 0
    %361 = vmatpush1.bf16.msra.mxu0 %v348
    %362 = vmatprep.subr.bf16.mxu0 0
    %363 = vmatpush1.bf16.msra.mxu0 %v347
    %364 = vmatprep.subr.bf16.mxu0 0
    %365 = vmatpush1.bf16.msra.mxu0 %v346
    %366 = vmatprep.subr.bf16.mxu0 0
    %367 = vmatpush1.bf16.msra.mxu0 %v345
    %368 = vmatprep.subr.bf16.mxu0 0
    %369 = vmatpush1.bf16.msra.mxu0 %v344
    %370 = vmatprep.subr.bf16.mxu0 0
    %371 = vmatpush1.bf16.msra.mxu0 %v343
    %372 = vmatprep.subr.bf16.mxu0 0
    %373 = vmatpush1.bf16.msra.mxu0 %v342
    %374 = vmatprep.subr.bf16.mxu0 0
    %375 = vmatpush2.bf16.msra.mxu0 0
    %376 = vmatprep.subr.bf16.mxu0 0
    %377 = vmatpush2.bf16.msra.mxu0 0
    %378 = vmatprep.subr.bf16.mxu0 0
    %379 = vmatpush2.bf16.msra.mxu0 0
    %380 = vmatprep.subr.bf16.mxu0 0
    %381 = vmatpush2.bf16.msra.mxu0 0
    %382 = vmatprep.subr.bf16.mxu0 0
    %383 = vmatpush2.bf16.msra.mxu0 0
    %384 = vmatprep.subr.bf16.mxu0 0
    %385 = vmatpush2.bf16.msra.mxu0 0
    %386 = vmatprep.subr.bf16.mxu0 0
    %387 = vmatpush2.bf16.msra.mxu0 0
    %388 = vmatprep.subr.bf16.mxu0 0
    %389 = vmatpush2.bf16.msra.mxu0 0
    %390 = vmatprep.mubr.bf16.mxu0 0
    %391 = vmatmul.mubr.bf16.gmra.mxu0 %v286
    %v392 = vpop.f32.mrf.mxu0
    %v393 = vadd.f32 %v308, %v392
    %v394 = vpop.f32.mrf.mxu0
    %v395 = vpop.f32.mrf.mxu0
    %v396 = vpop.f32.mrf.mxu0
    %397 = vdwg.mxu0
    %v398 = vmax.f32 %v393, 0.0
    %v399 = vpack.c.bf16 %v398, %v398
    %v400 = vld [vmem:[#allocation10] sm:$0xf]
    %v401 = vld [vmem:[#allocation10 + $0x4] sm:$0xf]
    %v402 = vld [vmem:[#allocation10 + $0x8] sm:$0xf]
    %v403 = vld [vmem:[#allocation10 + $0xc] sm:$0xf]
    %v404 = vld [vmem:[#allocation10 + $0x10] sm:$0xf]
    %v405 = vld [vmem:[#allocation10 + $0x14] sm:$0xf]
    %v406 = vld [vmem:[#allocation10 + $0x18] sm:$0xf]
    %v407 = vld [vmem:[#allocation10 + $0x1c] sm:$0xf]
    %v408 = vld [vmem:[#allocation10 + $0x20] sm:$0xf]
    %v409 = vld [vmem:[#allocation10 + $0x24] sm:$0xf]
    %v410 = vld [vmem:[#allocation10 + $0x28] sm:$0xf]
    %v411 = vld [vmem:[#allocation10 + $0x2c] sm:$0xf]
    %v412 = vld [vmem:[#allocation10 + $0x30] sm:$0xf]
    %v413 = vld [vmem:[#allocation10 + $0x34] sm:$0xf]
    %v414 = vld [vmem:[#allocation10 + $0x38] sm:$0xf]
    %v415 = vld [vmem:[#allocation10 + $0x3c] sm:$0xf]
    %v416 = vld [vmem:[%s8] sm:$0x1]
    %v418 = vlaneseq
    %v419 = vshrl.u32 %v418, 7
    %v420 = vsub.s32 0, %v419
    %v421 = vrot.slane %v416, %v420
    %v439 = vunpack.c.l.b16 %v400
    %v440 = vunpack.c.l.b16 %v401
    %v441 = vunpack.c.l.b16 %v402
    %v442 = vunpack.c.l.b16 %v403
    %v443 = vunpack.c.l.b16 %v404
    %v444 = vunpack.c.l.b16 %v405
    %v445 = vunpack.c.l.b16 %v406
    %v446 = vunpack.c.l.b16 %v407
    %v447 = vunpack.c.l.b16 %v408
    %v448 = vunpack.c.l.b16 %v409
    %v449 = vunpack.c.l.b16 %v410
    %v450 = vunpack.c.l.b16 %v411
    %v451 = vunpack.c.l.b16 %v412
    %v452 = vunpack.c.l.b16 %v413
    %v453 = vunpack.c.l.b16 %v414
    %v454 = vunpack.c.l.b16 %v415
    %v455 = vpack.c.b16 %v440, %v439
    %v456 = vpack.c.b16 %v442, %v441
    %v457 = vpack.c.b16 %v444, %v443
    %v458 = vpack.c.b16 %v446, %v445
    %v459 = vpack.c.b16 %v448, %v447
    %v460 = vpack.c.b16 %v450, %v449
    %v461 = vpack.c.b16 %v452, %v451
    %v462 = vpack.c.b16 %v454, %v453
    %471 = vmatprep.subr.bf16.mxu0 0
    %472 = vmatpush1.bf16.msra.mxu0 %v462
    %473 = vmatprep.subr.bf16.mxu0 0
    %474 = vmatpush1.bf16.msra.mxu0 %v461
    %475 = vmatprep.subr.bf16.mxu0 0
    %476 = vmatpush1.bf16.msra.mxu0 %v460
    %477 = vmatprep.subr.bf16.mxu0 0
    %478 = vmatpush1.bf16.msra.mxu0 %v459
    %479 = vmatprep.subr.bf16.mxu0 0
    %480 = vmatpush1.bf16.msra.mxu0 %v458
    %481 = vmatprep.subr.bf16.mxu0 0
    %482 = vmatpush1.bf16.msra.mxu0 %v457
    %483 = vmatprep.subr.bf16.mxu0 0
    %484 = vmatpush1.bf16.msra.mxu0 %v456
    %485 = vmatprep.subr.bf16.mxu0 0
    %486 = vmatpush1.bf16.msra.mxu0 %v455
    %487 = vmatprep.subr.bf16.mxu0 0
    %488 = vmatpush2.bf16.msra.mxu0 0
    %489 = vmatprep.subr.bf16.mxu0 0
    %490 = vmatpush2.bf16.msra.mxu0 0
    %491 = vmatprep.subr.bf16.mxu0 0
    %492 = vmatpush2.bf16.msra.mxu0 0
    %493 = vmatprep.subr.bf16.mxu0 0
    %494 = vmatpush2.bf16.msra.mxu0 0
    %495 = vmatprep.subr.bf16.mxu0 0
    %496 = vmatpush2.bf16.msra.mxu0 0
    %497 = vmatprep.subr.bf16.mxu0 0
    %498 = vmatpush2.bf16.msra.mxu0 0
    %499 = vmatprep.subr.bf16.mxu0 0
    %500 = vmatpush2.bf16.msra.mxu0 0
    %501 = vmatprep.subr.bf16.mxu0 0
    %502 = vmatpush2.bf16.msra.mxu0 0
    %503 = vmatprep.mubr.bf16.mxu0 0
    %504 = vmatmul.mubr.bf16.gmra.mxu0 %v399
    %v505 = vpop.f32.mrf.mxu0
    %v506 = vadd.f32 %v421, %v505
    %v507 = vpop.f32.mrf.mxu0
    %v508 = vpop.f32.mrf.mxu0
    %v509 = vpop.f32.mrf.mxu0
    %510 = vdwg.mxu0
    %vm511 = vcmask 31744
    %512 = vst.msk [vmem:[%s9] sm:$0xff] %vm511, %v506
    // Predicated region
    $region62: #{forward.1} parent=1 // pred_check
      _
    $region63: #{forward.1} parent=1 // pred_check_branch
      %514 = sbr.rel (0) target = $region65
    $region64: #{forward.1} parent=1 // pred_region
      _
    $region65: #{forward.1} parent=1 // pred_fallthru
      _
    // Predicated region
    $region66: #{forward.1} parent=1 // pred_check
      _
    $region67: #{forward.1} parent=1 // pred_check_branch
      %516 = sbr.rel (0) target = $region69
    $region68: #{forward.1} parent=1 // pred_region
      _
    $region69: #{forward.1} parent=1 // pred_fallthru
      _
    %517 = vsyncpa [#allocation3], 1
    %518 = vsyncpa [#allocation5], 1
    %519 = vsyncpa [#allocation8], 1
    %520 = vsyncpa [#allocation11], 1

</llo_original>
